<compile_context>
chip_gen: v6e
topology: v6e:2x2x1
jax: 0.10.0
libtpu: 0.0.40
codegen_flags: <defaults>
</compile_context>

<pallas_src>
from functools import partial

import jax
import jax.numpy as jnp
from jax.experimental import pallas as pl
from jax.experimental.pallas import tpu as pltpu


def _periodic_pad_kernel(x_ref, o_ref, *, pad_width: int):
    # x_ref: (Cb, H, W) VMEM block; o_ref: (Cb, H + 2p, W + 2p) VMEM block.
    p = pad_width
    Cb, H, W = x_ref.shape
    Wo = W + 2 * p

    # Assemble the fully padded tile in registers, then do ONE lane-dense,
    # sublane-dense store (bulk store starts at lane 0 / sublane 0).
    xw = jnp.concatenate(
        [x_ref[:, :, W - p:], x_ref[...], x_ref[:, :, :p]], axis=-1)   # (Cb, H, Wo)
    zrows = jnp.zeros((Cb, p, Wo), dtype=xw.dtype)
    o_ref[...] = jnp.concatenate([zrows, xw, zrows], axis=-2)          # (Cb, Ho, Wo)


def _vmem_budgets() -> tuple[int, int]:
    """(block-sizing budget, vmem_limit_bytes), generation-aware."""
    mib = 1024 * 1024
    try:
        cap = int(pltpu.get_tpu_info().vmem_capacity_bytes)
    except Exception:
        cap = 64 * mib  # conservative fallback (v7x-sized)
    if cap >= 128 * mib:          # v5e / v6e: 128 MiB VMEM
        return 48 * mib, 96 * mib
    return 24 * mib, 48 * mib     # v7x: 64 MiB VMEM per TensorCore


def _choose_cb(nc: int, h: int, w: int, ho: int, wo: int, itemsize: int,
               budget_bytes: int, min_steps: int = 8) -> int:
    """Channels per grid step: fit double-buffered in+out in the VMEM budget,
    but keep at least min(min_steps, nc) grid steps for megacore sharding."""
    per_channel = 2 * (h * w + ho * wo) * itemsize      # x2: double buffering
    vmem_cap = max(1, budget_bytes // max(1, per_channel))
    par_cap = max(1, nc // min(min_steps, nc))
    return max(1, min(vmem_cap, par_cap, nc))


def periodic_pad2d(x: jax.Array, pad_width: int) -> jax.Array:
    """Pallas implementation of PeriodicPad2d.forward for NCHW input."""
    N, C, H, W = x.shape
    p = int(pad_width)
    if p == 0:
        return x
    assert p <= W, "circular pad requires pad_width <= W (same as F.pad circular)"

    Ho, Wo = H + 2 * p, W + 2 * p
    NC = N * C
    itemsize = jnp.dtype(x.dtype).itemsize

    budget_bytes, vmem_limit = _vmem_budgets()
    Cb = _choose_cb(NC, H, W, Ho, Wo, itemsize, budget_bytes)

    xf = x.reshape(NC, H, W)                       # flatten N and C (free, contiguous)
    bytes_accessed = NC * (H * W + Ho * Wo) * itemsize

    out = pl.pallas_call(
        partial(_periodic_pad_kernel, pad_width=p),
        out_shape=jax.ShapeDtypeStruct((NC, Ho, Wo), x.dtype),
        grid=(pl.cdiv(NC, Cb),),                   # ragged last block allowed
        in_specs=[pl.BlockSpec((Cb, H, W), lambda i: (i, 0, 0))],
        out_specs=pl.BlockSpec((Cb, Ho, Wo), lambda i: (i, 0, 0)),
        compiler_params=pltpu.CompilerParams(
            dimension_semantics=("parallel",),
            vmem_limit_bytes=vmem_limit,
        ),
        cost_estimate=pl.CostEstimate(
            flops=0, transcendentals=0, bytes_accessed=bytes_accessed),
    )(xf)
    return out.reshape(N, C, Ho, Wo)


def _reference(x: jax.Array, pad_width: int) -> jax.Array:
    # Pure-JAX reference mirroring the PyTorch module.
    p = pad_width
    out = jnp.pad(x, ((0, 0), (0, 0), (0, 0), (p, p)), mode="wrap")
    out = jnp.pad(out, ((0, 0), (0, 0), (p, p), (0, 0)), mode="constant",
                  constant_values=0.0)
    return out


if __name__ == "__main__":
    # PeriodicPad2d has no learnable parameters; only pad_width from __init__.
    pad_width = 2
    N, C, H, W = 2, 4, 16, 16

    key = jax.random.PRNGKey(0)
    x = jax.random.normal(key, (N, C, H, W), dtype=jnp.float32)

    out = periodic_pad2d(x, pad_width)
    out = jax.block_until_ready(out)

    ref = _reference(x, pad_width)
    assert out.shape == (N, C, H + 2 * pad_width, W + 2 * pad_width), out.shape
    assert out.dtype == x.dtype
    assert jnp.allclose(out, ref), "Pallas output mismatch vs reference"

    print("KERNEL_OK")
</pallas_src>

<mosaic_0001>
module attributes {stable_mosaic.version = 11 : i64} {
  func.func @_periodic_pad_kernel(%arg0: i32, %arg1: memref<1x16x16xf32, #tpu.memory_space<vmem>>, %arg2: memref<1x20x20xf32, #tpu.memory_space<vmem>>) attributes {dimension_semantics = [#tpu.dimension_semantics<parallel>], iteration_bounds = array<i64: 8>, scalar_prefetch = 0 : i64, scratch_operands = 0 : i64, tpu.core_type = #tpu.core_type<tc>, window_params = [{transform_indices = @transform_0, window_bounds = array<i64: 1, 16, 16>}, {transform_indices = @transform_1, window_bounds = array<i64: 1, 20, 20>}]} {
    %c0 = arith.constant 0 : index
    %c0_0 = arith.constant 0 : index
    %c14 = arith.constant 14 : index
    %0 = vector.load %arg1[%c0, %c0_0, %c14] : memref<1x16x16xf32, #tpu.memory_space<vmem>>, vector<1x16x2xf32>
    %c0_1 = arith.constant 0 : index
    %c0_2 = arith.constant 0 : index
    %c0_3 = arith.constant 0 : index
    %1 = vector.load %arg1[%c0_1, %c0_2, %c0_3] : memref<1x16x16xf32, #tpu.memory_space<vmem>>, vector<1x16x16xf32>
    %c0_4 = arith.constant 0 : index
    %c0_5 = arith.constant 0 : index
    %c0_6 = arith.constant 0 : index
    %2 = vector.load %arg1[%c0_4, %c0_5, %c0_6] : memref<1x16x16xf32, #tpu.memory_space<vmem>>, vector<1x16x2xf32>
    %3 = tpu.concatenate %0, %1, %2 in 2 : vector<1x16x2xf32>, vector<1x16x16xf32>, vector<1x16x2xf32> -> vector<1x16x20xf32>
    %cst = arith.constant 0.000000e+00 : f32
    %4 = vector.broadcast %cst : f32 to vector<1x2x20xf32>
    %5 = tpu.concatenate %4, %3, %4 in 1 : vector<1x2x20xf32>, vector<1x16x20xf32>, vector<1x2x20xf32> -> vector<1x20x20xf32>
    %c0_7 = arith.constant 0 : index
    %c0_8 = arith.constant 0 : index
    %c0_9 = arith.constant 0 : index
    %6 = vector.load %arg2[%c0_7, %c0_8, %c0_9] : memref<1x20x20xf32, #tpu.memory_space<vmem>>, vector<1x20x20xf32>
    tpu.vector_store %arg2[%c0_7, %c0_8, %c0_9], %5 {strides = array<i32>} : memref<1x20x20xf32, #tpu.memory_space<vmem>>, vector<1x20x20xf32>,
    return
  }
  func.func @transform_0(%arg0: i32) -> (i32, i32, i32) {
    %c0_i32 = arith.constant 0 : i32
    %c0_i32_0 = arith.constant 0 : i32
    %c0_i32_1 = arith.constant 0 : i32
    return %arg0, %c0_i32, %c0_i32_0 : i32, i32, i32
  }
  func.func @transform_1(%arg0: i32) -> (i32, i32, i32) {
    %c0_i32 = arith.constant 0 : i32
    %c0_i32_0 = arith.constant 0 : i32
    %c0_i32_1 = arith.constant 0 : i32
    return %arg0, %c0_i32, %c0_i32_0 : i32, i32, i32
  }
}

</mosaic_0001>

<llo_original>
// kernel: tpu_custom_call.1
$region0: #{tpu_custom_call.1}
  #allocation0 [shape = 'u32[]', space=smem, size = 0x4, offset = 0x4, fixed_abs, tag = 'smem constant byte address 0x4 - core index']
  #allocation1 [shape = 'u32[144,128]{1,0:T(1,128)}', space=vmem, size = 0x12000, scoped, tag = 'internal scratch']
  %s0 = inlined_call_operand.hbm [shape: f32[8,16,16], index: 0, kind: input, shape index: {}]
  %s1 = inlined_call_operand.vmem [shape: f32[8,20,20], index: 1, kind: output, shape index: {}]
  %s2 = sld [smem:[#allocation0]]
  $region41: #{tpu_custom_call.1} parent=0
    _
  %s4 = ssub.s32 1, %s2
  %s5 = scalar_select 0, %s4, %s2
  $region1: #{tpu_custom_call.1} parent=0
    #allocation2 [shape = 'u8[16384]{0}', space=vmem, size = 0x4000, scoped, tag = 'input window, operand 0']
    #allocation3 [shape = 's32[2]{0}', space=sflag, size = 0x8, scoped, tag = 'scoped memory for tpu_custom_call.1']
    %6 = vsyncpa [#allocation3], 0
    %s7 = scalar_lea.sflag [#allocation3], 1
    %8 = vsyncpa %s7, 0
    loop: start=0, step=1, limit=10
    $region2: #{tpu_custom_call.1} parent=1 // loop_pre_header
      _
    $region3: #{tpu_custom_call.1} parent=1 // loop_header
      %s10 = sphi 0, %s14
      %p11 = scmp.ge.s32.totalorder %s10, 10
      %s20 = sphi 0, %s22
      %s23 = sphi 0, %s20
      %s24 = sphi 0, %s23
      %s40 = sphi 0, %s24
      %s46 = sphi 0, %s48
      %s49 = sphi 0, %s46
      %s50 = sphi 0, %s49
      %s66 = sphi 0, %s50
    $region4: #{tpu_custom_call.1} parent=1 // loop_header_branch
      %13 = sbr.rel (%p11) target = $region8
    $region5: #{tpu_custom_call.1} parent=1 // loop_body
      %s15 = ssub.s32 %s10, 1
      %s16 = ssub.s32 %s10, 2
      %s17 = sadd.s32 %s10, 1
      %s18 = ssub.s32 %s10, %s17
      %p19 = scmp.eq.s32.totalorder %s18, 0
      %s21 = sadd.s32 %s20, 1
      %s22 = scalar_select %p19, %s20, %s21
      %p25 = pneg %p19
      %p26 = scmp.eq.s32.totalorder %s10, 7
      %p27 = por %p25, %p26
      %p28 = scmp.ne.s32.totalorder %s20, %s23
      %p29 = scmp.eq.s32.totalorder %s10, 0
      %p30 = por %p28, %p29
      %p31 = scmp.ne.s32.totalorder %s20, %s23
      %p32 = scmp.eq.s32.totalorder %s15, 7
      %p33 = por %p31, %p32
      %p34 = scmp.ne.s32.totalorder %s23, %s24
      %p35 = scmp.eq.s32.totalorder %s15, 0
      %p36 = por %p34, %p35
      %p37 = scmp.ne.s32.totalorder %s23, %s24
      %p38 = scmp.eq.s32.totalorder %s16, 7
      %p39 = por %p37, %p38
      %p41 = scmp.ne.s32.totalorder %s24, %s40
      %p42 = scmp.eq.s32.totalorder %s16, 0
      %p43 = por %p41, %p42
      %s44 = ssub.s32 %s10, %s17
      %p45 = scmp.eq.s32.totalorder %s44, 0
      %s47 = sadd.s32 %s46, 1
      %s48 = scalar_select %p45, %s46, %s47
      %p51 = pneg %p45
      %p52 = scmp.eq.s32.totalorder %s10, 7
      %p53 = por %p51, %p52
      %p54 = scmp.ne.s32.totalorder %s46, %s49
      %p55 = scmp.eq.s32.totalorder %s10, 0
      %p56 = por %p54, %p55
      %p57 = scmp.ne.s32.totalorder %s46, %s49
      %p58 = scmp.eq.s32.totalorder %s15, 7
      %p59 = por %p57, %p58
      %p60 = scmp.ne.s32.totalorder %s49, %s50
      %p61 = scmp.eq.s32.totalorder %s15, 0
      %p62 = por %p60, %p61
      %p63 = scmp.ne.s32.totalorder %s49, %s50
      %p64 = scmp.eq.s32.totalorder %s16, 7
      %p65 = por %p63, %p64
      %p67 = scmp.ne.s32.totalorder %s50, %s66
      %p68 = scmp.eq.s32.totalorder %s16, 0
      %p69 = por %p67, %p68
      %p70 = scmp.le.s32.totalorder 1, %s10
      %p71 = scmp.lt.s32.totalorder %s10, 9
      %p72 = pnand %p70, %p71
      %p73 = pneg %p72
      // Predicated region
      $region9: #{tpu_custom_call.1} parent=5 // pred_check
        _
      $region10: #{tpu_custom_call.1} parent=5 // pred_check_branch
        %75 = sbr.rel (%p72) target = $region12
      $region11: #{tpu_custom_call.1} parent=5 // pred_region
        %s76 = ssub.s32 %s10, 1
      $region12: #{tpu_custom_call.1} parent=5 // pred_fallthru
        _
      %p77 = scmp.lt.s32.totalorder %s10, 8
      // Predicated region
      $region13: #{tpu_custom_call.1} parent=5 // pred_check
        %p78 = pneg %p77
      $region14: #{tpu_custom_call.1} parent=5 // pred_check_branch
        %80 = sbr.rel (%p78) target = $region16
      $region15: #{tpu_custom_call.1} parent=5 // pred_region
        // Predicated region
        $region17: #{tpu_custom_call.1} parent=15 // pred_check
          %p81 = pneg %p30
        $region18: #{tpu_custom_call.1} parent=15 // pred_check_branch
          %83 = sbr.rel (%p81) target = $region20
        $region19: #{tpu_custom_call.1} parent=15 // pred_region
          %s84 = sand.u32 %s20, 1
          %s85 = scalar_lea.sflag [#allocation3], %s84
          %s86 = sand.u32 %s20, 1
          %s87 = smul.addr %s86, 16
          %s88 = scalar_lea.vmem [#allocation2], %s87
          %s90 = ssub.s32 256, 256
          %91 = vsyncadd %s85, %s90
          %s92 = smul.addr %s10, 2
          %s93 = smul.addr %s92, 128
          %s94 = scalar_lea.hbm %s0, %s93
          %s95 = sshll.u32 %s88, 4
          %s96 = int_to_ptr.vmem [resolvable:$true] %s95
          %101 = dma.hbm_to_vmem [thread:$0]  %s94, 256, %s96, %s85, 128, 128, 8
        $region20: #{tpu_custom_call.1} parent=15 // pred_fallthru
          _
      $region16: #{tpu_custom_call.1} parent=5 // pred_fallthru
        _
      %p102 = scmp.le.s32.totalorder 1, %s10
      %p103 = scmp.lt.s32.totalorder %s10, 9
      %p104 = pnand %p102, %p103
      %p105 = pneg %p104
      // Predicated region
      $region21: #{tpu_custom_call.1} parent=5 // pred_check
        _
      $region22: #{tpu_custom_call.1} parent=5 // pred_check_branch
        %107 = sbr.rel (%p104) target = $region24
      $region23: #{tpu_custom_call.1} parent=5 // pred_region
        %s108 = ssub.s32 %s10, 1
        %s109 = sand.u32 %s23, 1
        %s110 = scalar_lea.sflag [#allocation3], %s109
        %s111 = sand.u32 %s23, 1
        %s112 = smul.addr %s111, 16
        %s113 = scalar_lea.vmem [#allocation2], %s112
        // Predicated region
        $region25: #{tpu_custom_call.1} parent=23 // pred_check
          %p114 = pneg %p36
        $region26: #{tpu_custom_call.1} parent=23 // pred_check_branch
          %116 = sbr.rel (%p114) target = $region28
        $region27: #{tpu_custom_call.1} parent=23 // pred_region
          %117 = dma.done %s110, 256
        $region28: #{tpu_custom_call.1} parent=23 // pred_fallthru
          _
        %s118 = sand.u32 %s23, 1
        %s119 = scalar_lea.sflag [#allocation3], %s118
        %s120 = sand.u32 %s23, 1
        %s121 = smul.addr %s120, 16
        %s122 = scalar_lea.vmem [#allocation2], %s121
        %p123 = pneg %p36
        %p124 = pneg %p33
        %p125 = pneg %p62
        %p126 = pneg %p59
        %p127 = scmp.lt.s32.totalorder %s15, 7
        %s128 = scalar_select %p127, %s15, 7
        %s129 = smul.addr %s128, 3
        %s130 = smul.addr %s129, 8
        %s131 = scalar_lea.vmem %s1, %s130
        %p132 = scmp.lt.s32.totalorder %s15, 7
        %s133 = scalar_select %p132, %s15, 7
        %s134 = smul.addr %s133, 3
        %s135 = smul.addr %s134, 8
        %s136 = scalar_lea.vmem %s1, %s135
        %v137 = vld [vmem:[%s113] sm:$0xff]
        %v138 = vld [vmem:[%s113 + $0x8] sm:$0xff]
        %141 = vrot.lane.b32.xlu0 %v137, 114
        %v142 = vpop.permute.xlu0 %141
        %143 = vrot.lane.b32.xlu0 %v138, 114
        %v144 = vpop.permute.xlu0 %143
        %147 = vrot.lane.b32.xlu0 %v137, 2
        %v148 = vpop.permute.xlu0 %147
        %149 = vrot.lane.b32.xlu0 %v138, 2
        %v150 = vpop.permute.xlu0 %149
        %153 = vrot.lane.b32.xlu0 %v137, 18
        %v154 = vpop.permute.xlu0 %153
        %155 = vrot.lane.b32.xlu0 %v138, 18
        %v156 = vpop.permute.xlu0 %155
        %vm159 = vcmask 15360
        %v160 = vsel %vm159, %v142, %v148
        %v161 = vsel %vm159, %v144, %v150
        %vm162 = vcmask 146432
        %v163 = vsel %vm162, %v160, %v154
        %v164 = vsel %vm162, %v161, %v156
        %vm167 = vcmask 1041408
        %v168 = vrot.slane %v163, 6
        %v169 = vrot.slane %v164, 6
        %v170 = vsel %vm167, %v168, %v169
        %v174 = vsel %vm167, 0.0, %v168
        %v175 = vsel %vm167, %v169, 0.0
        %vm176 = vcmask 162816
        %177 = vst.msk [vmem:[%s136] sm:$0xff] %vm176, %v174
        %178 = vst.msk [vmem:[%s136 + $0x8] sm:$0xff] %vm176, %v170
        %vm179 = vcmask 158720
        %180 = vst.msk [vmem:[%s136 + $0x10] sm:$0xf] %vm179, %v175
        %p181 = scmp.lt.s32.totalorder %s15, 7
        %s182 = scalar_select %p181, %s15, 7
        %s183 = smul.addr %s182, 3
        %s184 = smul.addr %s183, 8
        %s185 = scalar_lea.vmem %s1, %s184
        // Predicated region
        $region29: #{tpu_custom_call.1} parent=23 // pred_check
          %p186 = pneg %p59
        $region30: #{tpu_custom_call.1} parent=23 // pred_check_branch
          %188 = sbr.rel (%p186) target = $region32
        $region31: #{tpu_custom_call.1} parent=23 // pred_region
          _
        $region32: #{tpu_custom_call.1} parent=23 // pred_fallthru
          _
      $region24: #{tpu_custom_call.1} parent=5 // pred_fallthru
        _
      %p189 = scmp.le.s32.totalorder 2, %s10
      // Predicated region
      $region33: #{tpu_custom_call.1} parent=5 // pred_check
        %p190 = pneg %p189
      $region34: #{tpu_custom_call.1} parent=5 // pred_check_branch
        %192 = sbr.rel (%p190) target = $region36
      $region35: #{tpu_custom_call.1} parent=5 // pred_region
        %s193 = ssub.s32 %s10, 2
        // Predicated region
        $region37: #{tpu_custom_call.1} parent=35 // pred_check
          %p194 = pneg %p65
        $region38: #{tpu_custom_call.1} parent=35 // pred_check_branch
          %196 = sbr.rel (%p194) target = $region40
        $region39: #{tpu_custom_call.1} parent=35 // pred_region
          %p197 = scmp.lt.s32.totalorder %s16, 7
          %s198 = scalar_select %p197, %s16, 7
          %s199 = smul.addr %s198, 3
          %s200 = smul.addr %s199, 8
          %s201 = scalar_lea.vmem %s1, %s200
        $region40: #{tpu_custom_call.1} parent=35 // pred_fallthru
          _
      $region36: #{tpu_custom_call.1} parent=5 // pred_fallthru
        _
    $region6: #{tpu_custom_call.1} parent=1 // loop_footer
      %s14 = sadd.s32 1, %s10
    $region7: #{tpu_custom_call.1} parent=1 // loop_footer_branch
      %9 = sbr.rel target = $region3
    $region8: #{tpu_custom_call.1} parent=1 // loop_exit
      _
    %202 = vsyncpa [#allocation3], 1
    %s203 = scalar_lea.sflag [#allocation3], 1
    %204 = vsyncpa %s203, 1

</llo_original>
